<compile_context>
chip_gen: v7x
topology: tpu7x:2x2x1
jax: 0.10.0
libtpu: 0.0.40
codegen_flags: <defaults>
</compile_context>

<pallas_src>
import functools

import jax
import jax.numpy as jnp
from jax.experimental import pallas as pl
from jax.experimental.pallas import tpu as pltpu


def _value_encoder_kernel(x_ref, w_ref, b_ref, o_ref):
    # x_ref: (tm, P)    f32  -- P packed scalar values per lane-dense output row
    # w_ref: (P, P*D)   f32  -- block-diagonal weight: w_ref[p, q*D+d] = W[d] iff q == p
    # b_ref: (1, P*D)   f32  -- bias tiled P times along lanes
    # o_ref: (tm, P*D)  out  -- lane-dense output tile
    # Contraction on the MXU (idle otherwise): per-element VPU cost stays O(1)
    # regardless of P, keeping the kernel on the HBM-write roofline.
    y = jnp.dot(x_ref[...], w_ref[...], preferred_element_type=jnp.float32)
    y = jnp.maximum(y + b_ref[...], 0.0)          # bias + ReLU on the VPU
    o_ref[...] = y.astype(o_ref.dtype)


def _choose_pack(n, d, max_lanes=1024):
    """Largest pack <= 128 with n % pack == 0 and pack*d <= max_lanes,
    preferring (pack*d) % 128 == 0 (fully unmasked lane-dense stores)."""
    best, best_aligned = 1, 0
    for p in range(1, 129):
        if n % p != 0 or p * d > max_lanes:
            continue
        best = p
        if (p * d) % 128 == 0:
            best_aligned = p
    return best_aligned if best_aligned else best


@functools.partial(jax.jit, static_argnames=("out_dtype", "tile_bytes"))
def value_encoder(x, weight, bias, *, out_dtype=jnp.float32,
                  tile_bytes=2 * 1024 * 1024):
    """x: (B, L, K); weight: (D, 1); bias: (D,) -> (B, L, K, D) in out_dtype."""
    B, L, K = x.shape
    D = weight.shape[0]
    N = B * L * K

    w = weight.reshape(D).astype(jnp.float32)
    b = bias.reshape(D).astype(jnp.float32)

    # Pack `pack` logical rows per lane-dense output row.
    pack = _choose_pack(N, D)
    # TODO(synk): if N has no divisor giving pack*D >= 128 (e.g. N prime), this
    # falls back to narrow masked stores; a pad-N + wrapper-slice path would be
    # faster for that pathological case.
    rows = N // pack
    C = pack * D

    # Free, contiguous reshape: (B, L, K) -> (rows, pack).
    x_packed = x.reshape(rows, pack).astype(jnp.float32)

    # Block-diagonal weight: w_blk[p, q*D + d] = W[d] if q == p else 0.
    eye = jnp.eye(pack, dtype=jnp.float32)                          # (pack, pack)
    w_blk = (eye[:, :, None] * w[None, None, :]).reshape(pack, C)   # (pack, C)
    b_tiled = jnp.tile(b, pack).reshape(1, C)                       # (1, C)

    # Row tile sized so the f32 compute block is ~tile_bytes; double it for
    # narrower output dtypes so the HBM-side write tile stays big.  Multiple of
    # 8 (sublane rule) unless a single block covers the whole array; the final
    # partial block is masked by Pallas -> no pad / output slice.
    out_itemsize = jnp.dtype(out_dtype).itemsize
    tm = (tile_bytes // (C * 4)) * max(1, 4 // out_itemsize)
    tm = max(8, (tm // 8) * 8)
    tm_eff = rows if rows <= tm else tm
    grid = (pl.cdiv(rows, tm_eff),)

    out = pl.pallas_call(
        _value_encoder_kernel,
        out_shape=jax.ShapeDtypeStruct((rows, C), out_dtype),
        grid_spec=pltpu.PrefetchScalarGridSpec(
            num_scalar_prefetch=0,
            grid=grid,
            in_specs=[
                pl.BlockSpec((tm_eff, pack), lambda i: (i, 0)),   # packed x tile
                pl.BlockSpec((pack, C), lambda i: (0, 0)),        # block-diag weight
                pl.BlockSpec((1, C), lambda i: (0, 0)),           # tiled bias
            ],
            out_specs=pl.BlockSpec((tm_eff, C), lambda i: (i, 0)),
        ),
        compiler_params=pltpu.CompilerParams(
            dimension_semantics=("parallel",),      # megacore / 2-TC sharding (v7x)
            vmem_limit_bytes=32 * 1024 * 1024,      # headroom for lane-padded x buffer
        ),
    )(x_packed, w_blk, b_tiled)

    # (rows, pack*D) is row-major identical to (N, D): free reshape, no slice.
    return out.reshape(B, L, K, D)


if __name__ == "__main__":
    key = jax.random.PRNGKey(0)
    kx, kw, kb = jax.random.split(key, 3)

    B, L, K = 2, 8, 4
    output_dim = 32

    x = jax.random.normal(kx, (B, L, K), dtype=jnp.float32)
    # Deterministic "nn.Linear(1, output_dim)" params (synthetic init).
    weight = jax.random.normal(kw, (output_dim, 1), dtype=jnp.float32) * 0.5
    bias = jax.random.normal(kb, (output_dim,), dtype=jnp.float32) * 0.1

    # Default path: f32 output, matches the torch module exactly.
    out = value_encoder(x, weight, bias)
    jax.block_until_ready(out)

    ref = jnp.maximum(x[..., None] * weight[:, 0] + bias, 0.0)
    assert out.shape == (B, L, K, output_dim)
    assert out.dtype == jnp.float32
    assert jnp.allclose(out, ref, atol=1e-5, rtol=1e-5)

    # Optional write-bound fast path: bf16 output (~2x fewer HBM write bytes).
    out_bf16 = value_encoder(x, weight, bias, out_dtype=jnp.bfloat16)
    jax.block_until_ready(out_bf16)
    assert out_bf16.dtype == jnp.bfloat16
    assert jnp.allclose(out_bf16.astype(jnp.float32), ref, atol=5e-2, rtol=5e-2)

    print("KERNEL_OK")
</pallas_src>

<mosaic_0001>
module attributes {stable_mosaic.version = 11 : i64} {
  func.func @_value_encoder_kernel(%arg0: i32, %arg1: memref<2x32xf32, #tpu.memory_space<vmem>>, %arg2: memref<32x1024xf32, #tpu.memory_space<vmem>>, %arg3: memref<1x1024xf32, #tpu.memory_space<vmem>>, %arg4: memref<2x1024xf32, #tpu.memory_space<vmem>>) attributes {dimension_semantics = [#tpu.dimension_semantics<parallel>], iteration_bounds = array<i64: 1>, scalar_prefetch = 0 : i64, scratch_operands = 0 : i64, tpu.core_type = #tpu.core_type<tc>, window_params = [{transform_indices = @transform_0, window_bounds = array<i64: 2, 32>}, {pipeline_mode = #tpu.pipeline_mode<synchronous>, transform_indices = @transform_1, window_bounds = array<i64: 32, 1024>}, {pipeline_mode = #tpu.pipeline_mode<synchronous>, transform_indices = @transform_2, window_bounds = array<i64: 1, 1024>}, {transform_indices = @transform_3, window_bounds = array<i64: 2, 1024>}]} {
    %c0 = arith.constant 0 : index
    %c0_0 = arith.constant 0 : index
    %0 = vector.load %arg1[%c0, %c0_0] : memref<2x32xf32, #tpu.memory_space<vmem>>, vector<2x32xf32>
    %c0_1 = arith.constant 0 : index
    %c0_2 = arith.constant 0 : index
    %1 = vector.load %arg2[%c0_1, %c0_2] : memref<32x1024xf32, #tpu.memory_space<vmem>>, vector<32x1024xf32>
    %cst = arith.constant dense<0.000000e+00> : vector<2x1024xf32>
    %2 = tpu.matmul %0, %1, %cst {dimension_numbers = #tpu.dot_dimension_numbers<[1], [0], [0], [1], [0, 0, 1, 1], [], []>} : vector<2x32xf32>, vector<32x1024xf32>, vector<2x1024xf32> -> vector<2x1024xf32>
    %c0_3 = arith.constant 0 : index
    %c0_4 = arith.constant 0 : index
    %3 = vector.load %arg3[%c0_3, %c0_4] : memref<1x1024xf32, #tpu.memory_space<vmem>>, vector<1x1024xf32>
    %4 = vector.broadcast %3 : vector<1x1024xf32> to vector<2x1024xf32>
    %5 = arith.addf %2, %4 : vector<2x1024xf32>
    %cst_5 = arith.constant 0.000000e+00 : f32
    %6 = vector.broadcast %cst_5 : f32 to vector<2x1024xf32>
    %7 = arith.maximumf %5, %6 : vector<2x1024xf32>
    %c0_6 = arith.constant 0 : index
    %c0_7 = arith.constant 0 : index
    %8 = vector.load %arg4[%c0_6, %c0_7] : memref<2x1024xf32, #tpu.memory_space<vmem>>, vector<2x1024xf32>
    tpu.vector_store %arg4[%c0_6, %c0_7], %7 {strides = array<i32>} : memref<2x1024xf32, #tpu.memory_space<vmem>>, vector<2x1024xf32>,
    return
  }
  func.func @transform_0(%arg0: i32) -> (i32, i32) {
    %c0_i32 = arith.constant 0 : i32
    %c0_i32_0 = arith.constant 0 : i32
    return %arg0, %c0_i32 : i32, i32
  }
  func.func @transform_1(%arg0: i32) -> (i32, i32) {
    %c0_i32 = arith.constant 0 : i32
    %c0_i32_0 = arith.constant 0 : i32
    %c0_i32_1 = arith.constant 0 : i32
    return %c0_i32, %c0_i32_0 : i32, i32
  }
  func.func @transform_2(%arg0: i32) -> (i32, i32) {
    %c0_i32 = arith.constant 0 : i32
    %c0_i32_0 = arith.constant 0 : i32
    %c0_i32_1 = arith.constant 0 : i32
    return %c0_i32, %c0_i32_0 : i32, i32
  }
  func.func @transform_3(%arg0: i32) -> (i32, i32) {
    %c0_i32 = arith.constant 0 : i32
    %c0_i32_0 = arith.constant 0 : i32
    return %arg0, %c0_i32 : i32, i32
  }
}

</mosaic_0001>

<llo_original>
// kernel: tile.9
$region0: #{tile.9}
  %s0 = inlined_call_operand.vmem [shape: f32[32,32], index: 0, kind: input, shape index: {}]
  %s1 = inlined_call_operand.vmem [shape: f32[1,1024], index: 1, kind: output, shape index: {}]
  $region1: #{tile.9} parent=0
    #allocation0 [shape = 'u8[32768]{0}', space=vmem, size = 0x8000, scoped, tag = 'scoped mem for output reshape']
    %v2 = vld [vmem:[%s0] ss:$4 sm:$0xff]
    %vm3 = vcmask 261120
    %4 = vst.msk [vmem:[#allocation0] ss:$8 sm:$0xf] %vm3, %v2
    %5 = vst.msk [vmem:[#allocation0] ss:$8 sm:$0xf0] %vm3, %v2
    %s6 = scalar_lea.vmem %s0, 3
    %v7 = vld [vmem:[%s6] ss:$4 sm:$0xff]
    %8 = vrot.lane.b32.xlu0 %v7, 96
    %v9 = vpop.permute.xlu0 %8
    %vm10 = vcmask 1048320
    %11 = vst.msk [vmem:[#allocation0] ss:$8 sm:$0xf] %vm10, %v9
    %12 = vst.msk [vmem:[#allocation0] ss:$8 sm:$0xf0] %vm10, %v9
    %s13 = scalar_lea.vmem %s0, 2
    %v14 = vld [vmem:[%s13] ss:$4 sm:$0xff]
    %15 = vrot.lane.b32.xlu0 %v14, 64
    %v16 = vpop.permute.xlu0 %15
    %vm17 = vcmask 785920
    %18 = vst.msk [vmem:[#allocation0] ss:$8 sm:$0xf] %vm17, %v16
    %19 = vst.msk [vmem:[#allocation0] ss:$8 sm:$0xf0] %vm17, %v16
    %s20 = scalar_lea.vmem %s0, 1
    %v21 = vld [vmem:[%s20] ss:$4 sm:$0xff]
    %22 = vrot.lane.b32.xlu0 %v21, 32
    %v23 = vpop.permute.xlu0 %22
    %vm24 = vcmask 523520
    %25 = vst.msk [vmem:[#allocation0] ss:$8 sm:$0xf] %vm24, %v23
    %26 = vst.msk [vmem:[#allocation0] ss:$8 sm:$0xf0] %vm24, %v23
    %s28 = sshllo.u32 0, 1
    %v30 = vld [vmem:[#allocation0] sm:%s28]
    %s31 = sshllo.u32 0, 1
    %32 = vst [vmem:[%s1] sm:%s31] %v30
    %s33 = scalar_lea.vmem [#allocation0], 8
    %v34 = vld [vmem:[%s33] sm:%s28]
    %s35 = sshllo.u32 0, 1
    %s36 = scalar_lea.vmem %s1, 1
    %37 = vst [vmem:[%s36] sm:%s35] %v34
    %s38 = scalar_lea.vmem [#allocation0], 16
    %v39 = vld [vmem:[%s38] sm:%s28]
    %s40 = sshllo.u32 0, 1
    %s41 = smul.addr 1, 2
    %s42 = scalar_lea.vmem %s1, %s41
    %43 = vst [vmem:[%s42] sm:%s40] %v39
    %s44 = scalar_lea.vmem [#allocation0], 24
    %v45 = vld [vmem:[%s44] sm:%s28]
    %s46 = sshllo.u32 0, 1
    %s47 = smul.addr 1, 3
    %s48 = scalar_lea.vmem %s1, %s47
    %49 = vst [vmem:[%s48] sm:%s46] %v45
    %s50 = scalar_lea.vmem [#allocation0], 32
    %v51 = vld [vmem:[%s50] sm:%s28]
    %s52 = sshllo.u32 0, 1
    %s53 = smul.addr 1, 4
    %s54 = scalar_lea.vmem %s1, %s53
    %55 = vst [vmem:[%s54] sm:%s52] %v51
    %s56 = scalar_lea.vmem [#allocation0], 40
    %v57 = vld [vmem:[%s56] sm:%s28]
    %s58 = sshllo.u32 0, 1
    %s59 = smul.addr 1, 5
    %s60 = scalar_lea.vmem %s1, %s59
    %61 = vst [vmem:[%s60] sm:%s58] %v57
    %s62 = scalar_lea.vmem [#allocation0], 48
    %v63 = vld [vmem:[%s62] sm:%s28]
    %s64 = sshllo.u32 0, 1
    %s65 = smul.addr 1, 6
    %s66 = scalar_lea.vmem %s1, %s65
    %67 = vst [vmem:[%s66] sm:%s64] %v63
    %s68 = scalar_lea.vmem [#allocation0], 56
    %v69 = vld [vmem:[%s68] sm:%s28]
    %s70 = sshllo.u32 0, 1
    %s71 = smul.addr 1, 7
    %s72 = scalar_lea.vmem %s1, %s71
    %73 = vst [vmem:[%s72] sm:%s70] %v69

// kernel: value_encoder.1
$region0: #{value_encoder.1}
  #allocation0 [shape = 'u32[]', space=smem, size = 0x4, offset = 0x4, fixed_abs, tag = 'smem constant byte address 0x4 - core index']
  #allocation1 [shape = 'u32[144,128]{1,0:T(1,128)}', space=vmem, size = 0x12000, scoped, tag = 'internal scratch']
  %s0 = inlined_call_operand.vmem [shape: f32[2,32], index: 0, kind: input, shape index: {}]
  %s1 = inlined_call_operand.vmem [shape: f32[32,1024], index: 1, kind: input, shape index: {}]
  %s2 = inlined_call_operand.vmem [shape: f32[1,1024], index: 2, kind: input, shape index: {}]
  %s3 = inlined_call_operand.vmem [shape: f32[2,1024], index: 3, kind: output, shape index: {}]
  %s4 = sld [smem:[#allocation0]]
  $region22: #{value_encoder.1} parent=0
    _
  %s6 = ssub.s32 1, %s4
  %s7 = scalar_select 0, %s6, %s4
  // Predicated region
  $region2: #{value_encoder.1} parent=0 // pred_check
    _
  $region3: #{value_encoder.1} parent=0 // pred_check_branch
    %9 = sbr.rel (0) target = $region5
  $region4: #{value_encoder.1} parent=0 // pred_region
    _
  $region5: #{value_encoder.1} parent=0 // pred_fallthru
    _
  // Predicated region
  $region6: #{value_encoder.1} parent=0 // pred_check
    _
  $region7: #{value_encoder.1} parent=0 // pred_check_branch
    %11 = sbr.rel (0) target = $region9
  $region8: #{value_encoder.1} parent=0 // pred_region
    _
  $region9: #{value_encoder.1} parent=0 // pred_fallthru
    _
  // Predicated region
  $region10: #{value_encoder.1} parent=0 // pred_check
    _
  $region11: #{value_encoder.1} parent=0 // pred_check_branch
    %13 = sbr.rel (0) target = $region13
  $region12: #{value_encoder.1} parent=0 // pred_region
    _
  $region13: #{value_encoder.1} parent=0 // pred_fallthru
    _
  %v14 = vld [vmem:[%s0] sm:$0x3]
  %v15 = vld [vmem:[%s1] sm:$0xff]
  %v16 = vld [vmem:[%s1 + $0x8] sm:$0xff]
  %v17 = vld [vmem:[%s1 + $0x10] sm:$0xff]
  %v18 = vld [vmem:[%s1 + $0x18] sm:$0xff]
  %v19 = vld [vmem:[%s1 + $0x20] sm:$0xff]
  %v20 = vld [vmem:[%s1 + $0x28] sm:$0xff]
  %v21 = vld [vmem:[%s1 + $0x30] sm:$0xff]
  %v22 = vld [vmem:[%s1 + $0x38] sm:$0xff]
  %v23 = vld [vmem:[%s1 + $0x40] sm:$0xff]
  %v24 = vld [vmem:[%s1 + $0x48] sm:$0xff]
  %v25 = vld [vmem:[%s1 + $0x50] sm:$0xff]
  %v26 = vld [vmem:[%s1 + $0x58] sm:$0xff]
  %v27 = vld [vmem:[%s1 + $0x60] sm:$0xff]
  %v28 = vld [vmem:[%s1 + $0x68] sm:$0xff]
  %v29 = vld [vmem:[%s1 + $0x70] sm:$0xff]
  %v30 = vld [vmem:[%s1 + $0x78] sm:$0xff]
  %v31 = vld [vmem:[%s1 + $0x80] sm:$0xff]
  %v32 = vld [vmem:[%s1 + $0x88] sm:$0xff]
  %v33 = vld [vmem:[%s1 + $0x90] sm:$0xff]
  %v34 = vld [vmem:[%s1 + $0x98] sm:$0xff]
  %v35 = vld [vmem:[%s1 + $0xa0] sm:$0xff]
  %v36 = vld [vmem:[%s1 + $0xa8] sm:$0xff]
  %v37 = vld [vmem:[%s1 + $0xb0] sm:$0xff]
  %v38 = vld [vmem:[%s1 + $0xb8] sm:$0xff]
  %v39 = vld [vmem:[%s1 + $0xc0] sm:$0xff]
  %v40 = vld [vmem:[%s1 + $0xc8] sm:$0xff]
  %v41 = vld [vmem:[%s1 + $0xd0] sm:$0xff]
  %v42 = vld [vmem:[%s1 + $0xd8] sm:$0xff]
  %v43 = vld [vmem:[%s1 + $0xe0] sm:$0xff]
  %v44 = vld [vmem:[%s1 + $0xe8] sm:$0xff]
  %v45 = vld [vmem:[%s1 + $0xf0] sm:$0xff]
  %v46 = vld [vmem:[%s1 + $0xf8] sm:$0xff]
  %v47 = vld [vmem:[%s2] sm:$0xff]
  %v49 = vlaneseq
  %v50 = vshrl.u32 %v49, 7
  %v51 = vsub.s32 0, %v50
  %v52 = vrot.slane %v47, %v51
  %v53 = vlaneseq
  %v54 = vshrl.u32 %v53, 7
  %v55 = vsub.s32 1, %v54
  %v56 = vrot.slane %v47, %v55
  %v57 = vlaneseq
  %v58 = vshrl.u32 %v57, 7
  %v59 = vsub.s32 2, %v58
  %v60 = vrot.slane %v47, %v59
  %v61 = vlaneseq
  %v62 = vshrl.u32 %v61, 7
  %v63 = vsub.s32 3, %v62
  %v64 = vrot.slane %v47, %v63
  %v65 = vlaneseq
  %v66 = vshrl.u32 %v65, 7
  %v67 = vsub.s32 4, %v66
  %v68 = vrot.slane %v47, %v67
  %v69 = vlaneseq
  %v70 = vshrl.u32 %v69, 7
  %v71 = vsub.s32 5, %v70
  %v72 = vrot.slane %v47, %v71
  %v73 = vlaneseq
  %v74 = vshrl.u32 %v73, 7
  %v75 = vsub.s32 6, %v74
  %v76 = vrot.slane %v47, %v75
  %v77 = vlaneseq
  %v78 = vshrl.u32 %v77, 7
  %v79 = vsub.s32 7, %v78
  %v80 = vrot.slane %v47, %v79
  %vm89 = vcmask 261120
  %v91 = vsel %vm89, %v14, 0
  %93 = vmatprep.subr.mxu0 %v16
  %94 = vmatpush1.msra.mxu0 %v15
  %95 = vmatprep.subr.mxu0 %v24
  %96 = vmatpush1.msra.mxu0 %v23
  %97 = vmatprep.subr.mxu0 %v32
  %98 = vmatpush1.msra.mxu0 %v31
  %99 = vmatprep.subr.mxu0 %v40
  %100 = vmatpush1.msra.mxu0 %v39
  %101 = vmatprep.subr.mxu0 0.0
  %102 = vmatpush1.msra.mxu0 0.0
  %103 = vmatprep.subr.mxu0 0.0
  %104 = vmatpush1.msra.mxu0 0.0
  %105 = vmatprep.subr.mxu0 0.0
  %106 = vmatpush1.msra.mxu0 0.0
  %107 = vmatprep.subr.mxu0 0.0
  %108 = vmatpush1.msra.mxu0 0.0
  %109 = vmatprep.subr.mxu0 0.0
  %110 = vmatpush1.msra.mxu0 0.0
  %111 = vmatprep.subr.mxu0 0.0
  %112 = vmatpush1.msra.mxu0 0.0
  %113 = vmatprep.subr.mxu0 0.0
  %114 = vmatpush1.msra.mxu0 0.0
  %115 = vmatprep.subr.mxu0 0.0
  %116 = vmatpush1.msra.mxu0 0.0
  %117 = vmatprep.subr.mxu0 0.0
  %118 = vmatpush1.msra.mxu0 0.0
  %119 = vmatprep.subr.mxu0 0.0
  %120 = vmatpush1.msra.mxu0 0.0
  %121 = vmatprep.subr.mxu0 0.0
  %122 = vmatpush1.msra.mxu0 0.0
  %123 = vmatprep.subr.mxu0 0.0
  %124 = vmatpush1.msra.mxu0 0.0
  %125 = vmatprep.subr.mxu0 0.0
  %126 = vmatpush1.msra.mxu0 0.0
  %127 = vmatprep.subr.mxu0 0.0
  %128 = vmatpush1.msra.mxu0 0.0
  %129 = vmatprep.subr.mxu0 0.0
  %130 = vmatpush1.msra.mxu0 0.0
  %131 = vmatprep.subr.mxu0 0.0
  %132 = vmatpush1.msra.mxu0 0.0
  %133 = vmatprep.subr.mxu0 0.0
  %134 = vmatpush1.msra.mxu0 0.0
  %135 = vmatprep.subr.mxu0 0.0
  %136 = vmatpush1.msra.mxu0 0.0
  %137 = vmatprep.subr.mxu0 0.0
  %138 = vmatpush1.msra.mxu0 0.0
  %139 = vmatprep.subr.mxu0 0.0
  %140 = vmatpush1.msra.mxu0 0.0
  %141 = vmatprep.subr.mxu0 0.0
  %142 = vmatpush1.msra.mxu0 0.0
  %143 = vmatprep.subr.mxu0 0.0
  %144 = vmatpush1.msra.mxu0 0.0
  %145 = vmatprep.subr.mxu0 0.0
  %146 = vmatpush1.msra.mxu0 0.0
  %147 = vmatprep.subr.mxu0 0.0
  %148 = vmatpush1.msra.mxu0 0.0
  %149 = vmatprep.subr.mxu0 0.0
  %150 = vmatpush1.msra.mxu0 0.0
  %151 = vmatprep.subr.mxu0 0.0
  %152 = vmatpush1.msra.mxu0 0.0
  %153 = vmatprep.subr.mxu0 0.0
  %154 = vmatpush1.msra.mxu0 0.0
  %155 = vmatprep.subr.mxu0 0.0
  %156 = vmatpush1.msra.mxu0 0.0
  %157 = vmatprep.mubr.f32.mxu0 0.0
  %158 = vmatmul.mubr.f32.gmra.mrb[0].mxu0 %v91
  %v159 = vpop.f32.mrb[0].mxu0
  %v160 = vadd.f32 %v52, %v159
  %v161 = vpop.f32.mrb[0].mxu0
  %v162 = vadd.f32 %v56, %v161
  %163 = vdwg.mxu0
  %164 = vmatprep.subr.mxu0 %v18
  %165 = vmatpush1.msra.mxu0 %v17
  %166 = vmatprep.subr.mxu0 %v26
  %167 = vmatpush1.msra.mxu0 %v25
  %168 = vmatprep.subr.mxu0 %v34
  %169 = vmatpush1.msra.mxu0 %v33
  %170 = vmatprep.subr.mxu0 %v42
  %171 = vmatpush1.msra.mxu0 %v41
  %172 = vmatprep.subr.mxu0 0.0
  %173 = vmatpush1.msra.mxu0 0.0
  %174 = vmatprep.subr.mxu0 0.0
  %175 = vmatpush1.msra.mxu0 0.0
  %176 = vmatprep.subr.mxu0 0.0
  %177 = vmatpush1.msra.mxu0 0.0
  %178 = vmatprep.subr.mxu0 0.0
  %179 = vmatpush1.msra.mxu0 0.0
  %180 = vmatprep.subr.mxu0 0.0
  %181 = vmatpush1.msra.mxu0 0.0
  %182 = vmatprep.subr.mxu0 0.0
  %183 = vmatpush1.msra.mxu0 0.0
  %184 = vmatprep.subr.mxu0 0.0
  %185 = vmatpush1.msra.mxu0 0.0
  %186 = vmatprep.subr.mxu0 0.0
  %187 = vmatpush1.msra.mxu0 0.0
  %188 = vmatprep.subr.mxu0 0.0
  %189 = vmatpush1.msra.mxu0 0.0
  %190 = vmatprep.subr.mxu0 0.0
  %191 = vmatpush1.msra.mxu0 0.0
  %192 = vmatprep.subr.mxu0 0.0
  %193 = vmatpush1.msra.mxu0 0.0
  %194 = vmatprep.subr.mxu0 0.0
  %195 = vmatpush1.msra.mxu0 0.0
  %196 = vmatprep.subr.mxu0 0.0
  %197 = vmatpush1.msra.mxu0 0.0
  %198 = vmatprep.subr.mxu0 0.0
  %199 = vmatpush1.msra.mxu0 0.0
  %200 = vmatprep.subr.mxu0 0.0
  %201 = vmatpush1.msra.mxu0 0.0
  %202 = vmatprep.subr.mxu0 0.0
  %203 = vmatpush1.msra.mxu0 0.0
  %204 = vmatprep.subr.mxu0 0.0
  %205 = vmatpush1.msra.mxu0 0.0
  %206 = vmatprep.subr.mxu0 0.0
  %207 = vmatpush1.msra.mxu0 0.0
  %208 = vmatprep.subr.mxu0 0.0
  %209 = vmatpush1.msra.mxu0 0.0
  %210 = vmatprep.subr.mxu0 0.0
  %211 = vmatpush1.msra.mxu0 0.0
  %212 = vmatprep.subr.mxu0 0.0
  %213 = vmatpush1.msra.mxu0 0.0
  %214 = vmatprep.subr.mxu0 0.0
  %215 = vmatpush1.msra.mxu0 0.0
  %216 = vmatprep.subr.mxu0 0.0
  %217 = vmatpush1.msra.mxu0 0.0
  %218 = vmatprep.subr.mxu0 0.0
  %219 = vmatpush1.msra.mxu0 0.0
  %220 = vmatprep.subr.mxu0 0.0
  %221 = vmatpush1.msra.mxu0 0.0
  %222 = vmatprep.subr.mxu0 0.0
  %223 = vmatpush1.msra.mxu0 0.0
  %224 = vmatprep.subr.mxu0 0.0
  %225 = vmatpush1.msra.mxu0 0.0
  %226 = vmatprep.subr.mxu0 0.0
  %227 = vmatpush1.msra.mxu0 0.0
  %228 = vmatprep.mubr.f32.mxu0 0.0
  %229 = vmatmul.mubr.f32.gmra.mrb[0].mxu0 %v91
  %v230 = vpop.f32.mrb[0].mxu0
  %v231 = vadd.f32 %v60, %v230
  %v232 = vpop.f32.mrb[0].mxu0
  %v233 = vadd.f32 %v64, %v232
  %234 = vdwg.mxu0
  %235 = vmatprep.subr.mxu0 %v20
  %236 = vmatpush1.msra.mxu0 %v19
  %237 = vmatprep.subr.mxu0 %v28
  %238 = vmatpush1.msra.mxu0 %v27
  %239 = vmatprep.subr.mxu0 %v36
  %240 = vmatpush1.msra.mxu0 %v35
  %241 = vmatprep.subr.mxu0 %v44
  %242 = vmatpush1.msra.mxu0 %v43
  %243 = vmatprep.subr.mxu0 0.0
  %244 = vmatpush1.msra.mxu0 0.0
  %245 = vmatprep.subr.mxu0 0.0
  %246 = vmatpush1.msra.mxu0 0.0
  %247 = vmatprep.subr.mxu0 0.0
  %248 = vmatpush1.msra.mxu0 0.0
  %249 = vmatprep.subr.mxu0 0.0
  %250 = vmatpush1.msra.mxu0 0.0
  %251 = vmatprep.subr.mxu0 0.0
  %252 = vmatpush1.msra.mxu0 0.0
  %253 = vmatprep.subr.mxu0 0.0
  %254 = vmatpush1.msra.mxu0 0.0
  %255 = vmatprep.subr.mxu0 0.0
  %256 = vmatpush1.msra.mxu0 0.0
  %257 = vmatprep.subr.mxu0 0.0
  %258 = vmatpush1.msra.mxu0 0.0
  %259 = vmatprep.subr.mxu0 0.0
  %260 = vmatpush1.msra.mxu0 0.0
  %261 = vmatprep.subr.mxu0 0.0
  %262 = vmatpush1.msra.mxu0 0.0
  %263 = vmatprep.subr.mxu0 0.0
  %264 = vmatpush1.msra.mxu0 0.0
  %265 = vmatprep.subr.mxu0 0.0
  %266 = vmatpush1.msra.mxu0 0.0
  %267 = vmatprep.subr.mxu0 0.0
  %268 = vmatpush1.msra.mxu0 0.0
  %269 = vmatprep.subr.mxu0 0.0
  %270 = vmatpush1.msra.mxu0 0.0
  %271 = vmatprep.subr.mxu0 0.0
  %272 = vmatpush1.msra.mxu0 0.0
  %273 = vmatprep.subr.mxu0 0.0
  %274 = vmatpush1.msra.mxu0 0.0
  %275 = vmatprep.subr.mxu0 0.0
  %276 = vmatpush1.msra.mxu0 0.0
  %277 = vmatprep.subr.mxu0 0.0
  %278 = vmatpush1.msra.mxu0 0.0
  %279 = vmatprep.subr.mxu0 0.0
  %280 = vmatpush1.msra.mxu0 0.0
  %281 = vmatprep.subr.mxu0 0.0
  %282 = vmatpush1.msra.mxu0 0.0
  %283 = vmatprep.subr.mxu0 0.0
  %284 = vmatpush1.msra.mxu0 0.0
  %285 = vmatprep.subr.mxu0 0.0
  %286 = vmatpush1.msra.mxu0 0.0
  %287 = vmatprep.subr.mxu0 0.0
  %288 = vmatpush1.msra.mxu0 0.0
  %289 = vmatprep.subr.mxu0 0.0
  %290 = vmatpush1.msra.mxu0 0.0
  %291 = vmatprep.subr.mxu0 0.0
  %292 = vmatpush1.msra.mxu0 0.0
  %293 = vmatprep.subr.mxu0 0.0
  %294 = vmatpush1.msra.mxu0 0.0
  %295 = vmatprep.subr.mxu0 0.0
  %296 = vmatpush1.msra.mxu0 0.0
  %297 = vmatprep.subr.mxu0 0.0
  %298 = vmatpush1.msra.mxu0 0.0
  %299 = vmatprep.mubr.f32.mxu0 0.0
  %300 = vmatmul.mubr.f32.gmra.mrb[0].mxu0 %v91
  %v301 = vpop.f32.mrb[0].mxu0
  %v302 = vadd.f32 %v68, %v301
  %v303 = vpop.f32.mrb[0].mxu0
  %v304 = vadd.f32 %v72, %v303
  %305 = vdwg.mxu0
  %306 = vmatprep.subr.mxu0 %v22
  %307 = vmatpush1.msra.mxu0 %v21
  %308 = vmatprep.subr.mxu0 %v30
  %309 = vmatpush1.msra.mxu0 %v29
  %310 = vmatprep.subr.mxu0 %v38
  %311 = vmatpush1.msra.mxu0 %v37
  %312 = vmatprep.subr.mxu0 %v46
  %313 = vmatpush1.msra.mxu0 %v45
  %314 = vmatprep.subr.mxu0 0.0
  %315 = vmatpush1.msra.mxu0 0.0
  %316 = vmatprep.subr.mxu0 0.0
  %317 = vmatpush1.msra.mxu0 0.0
  %318 = vmatprep.subr.mxu0 0.0
  %319 = vmatpush1.msra.mxu0 0.0
  %320 = vmatprep.subr.mxu0 0.0
  %321 = vmatpush1.msra.mxu0 0.0
  %322 = vmatprep.subr.mxu0 0.0
  %323 = vmatpush1.msra.mxu0 0.0
  %324 = vmatprep.subr.mxu0 0.0
  %325 = vmatpush1.msra.mxu0 0.0
  %326 = vmatprep.subr.mxu0 0.0
  %327 = vmatpush1.msra.mxu0 0.0
  %328 = vmatprep.subr.mxu0 0.0
  %329 = vmatpush1.msra.mxu0 0.0
  %330 = vmatprep.subr.mxu0 0.0
  %331 = vmatpush1.msra.mxu0 0.0
  %332 = vmatprep.subr.mxu0 0.0
  %333 = vmatpush1.msra.mxu0 0.0
  %334 = vmatprep.subr.mxu0 0.0
  %335 = vmatpush1.msra.mxu0 0.0
  %336 = vmatprep.subr.mxu0 0.0
  %337 = vmatpush1.msra.mxu0 0.0
  %338 = vmatprep.subr.mxu0 0.0
  %339 = vmatpush1.msra.mxu0 0.0
  %340 = vmatprep.subr.mxu0 0.0
  %341 = vmatpush1.msra.mxu0 0.0
  %342 = vmatprep.subr.mxu0 0.0
  %343 = vmatpush1.msra.mxu0 0.0
  %344 = vmatprep.subr.mxu0 0.0
  %345 = vmatpush1.msra.mxu0 0.0
  %346 = vmatprep.subr.mxu0 0.0
  %347 = vmatpush1.msra.mxu0 0.0
  %348 = vmatprep.subr.mxu0 0.0
  %349 = vmatpush1.msra.mxu0 0.0
  %350 = vmatprep.subr.mxu0 0.0
  %351 = vmatpush1.msra.mxu0 0.0
  %352 = vmatprep.subr.mxu0 0.0
  %353 = vmatpush1.msra.mxu0 0.0
  %354 = vmatprep.subr.mxu0 0.0
  %355 = vmatpush1.msra.mxu0 0.0
  %356 = vmatprep.subr.mxu0 0.0
  %357 = vmatpush1.msra.mxu0 0.0
  %358 = vmatprep.subr.mxu0 0.0
  %359 = vmatpush1.msra.mxu0 0.0
  %360 = vmatprep.subr.mxu0 0.0
  %361 = vmatpush1.msra.mxu0 0.0
  %362 = vmatprep.subr.mxu0 0.0
  %363 = vmatpush1.msra.mxu0 0.0
  %364 = vmatprep.subr.mxu0 0.0
  %365 = vmatpush1.msra.mxu0 0.0
  %366 = vmatprep.subr.mxu0 0.0
  %367 = vmatpush1.msra.mxu0 0.0
  %368 = vmatprep.subr.mxu0 0.0
  %369 = vmatpush1.msra.mxu0 0.0
  %370 = vmatprep.mubr.f32.mxu0 0.0
  %371 = vmatmul.mubr.f32.gmra.mrb[0].mxu0 %v91
  %v372 = vpop.f32.mrb[0].mxu0
  %v373 = vadd.f32 %v76, %v372
  %v374 = vpop.f32.mrb[0].mxu0
  %v375 = vadd.f32 %v80, %v374
  %376 = vdwg.mxu0
  %v377 = vmax.f32 %v160, 0.0
  %v378 = vmax.f32 %v162, 0.0
  %v379 = vmax.f32 %v231, 0.0
  %v380 = vmax.f32 %v233, 0.0
  %v381 = vmax.f32 %v302, 0.0
  %v382 = vmax.f32 %v304, 0.0
  %v383 = vmax.f32 %v373, 0.0
  %v384 = vmax.f32 %v375, 0.0
  %v393 = vcombine.low %v377, %v378
  %v394 = vcombine.low %v379, %v380
  %v396 = vunpack.c.l.s4 1983009808
  %v397 = vunpack.c.0.s8 %v396
  %v398 = vlaneseq
  %v399 = vshrl.u32 %v398, 7
  %v400 = vsub.s32 %v397, %v399
  %v401 = vrot.slane %v393, %v400
  %v403 = vunpack.c.l.s4 1983009808
  %v404 = vunpack.c.0.s8 %v403
  %v405 = vlaneseq
  %v406 = vshrl.u32 %v405, 7
  %v407 = vsub.s32 %v404, %v406
  %v408 = vrot.slane %v394, %v407
  %v409 = vcombine.low %v401, %v408
  %v410 = vcombine.low %v381, %v382
  %v411 = vcombine.low %v383, %v384
  %v413 = vunpack.c.l.s4 1983009808
  %v414 = vunpack.c.0.s8 %v413
  %v415 = vlaneseq
  %v416 = vshrl.u32 %v415, 7
  %v417 = vsub.s32 %v414, %v416
  %v418 = vrot.slane %v410, %v417
  %v420 = vunpack.c.l.s4 1983009808
  %v421 = vunpack.c.0.s8 %v420
  %v422 = vlaneseq
  %v423 = vshrl.u32 %v422, 7
  %v424 = vsub.s32 %v421, %v423
  %v425 = vrot.slane %v411, %v424
  %v426 = vcombine.low %v418, %v425
  %429 = vst [vmem:[%s3] sm:$0xff] %v409
  %430 = vst [vmem:[%s3 + $0x8] sm:$0xff] %v426
  // Predicated region
  $region14: #{value_encoder.1} parent=0 // pred_check
    _
  $region15: #{value_encoder.1} parent=0 // pred_check_branch
    %432 = sbr.rel (0) target = $region17
  $region16: #{value_encoder.1} parent=0 // pred_region
    _
  $region17: #{value_encoder.1} parent=0 // pred_fallthru
    _
  // Predicated region
  $region18: #{value_encoder.1} parent=0 // pred_check
    _
  $region19: #{value_encoder.1} parent=0 // pred_check_branch
    %434 = sbr.rel (0) target = $region21
  $region20: #{value_encoder.1} parent=0 // pred_region
    _
  $region21: #{value_encoder.1} parent=0 // pred_fallthru
    _

</llo_original>
